<compile_context>
chip_gen: v6e
topology: v6e:2x2x1
jax: 0.10.0
libtpu: 0.0.40
codegen_flags: <defaults>
</compile_context>

<pallas_src>
import functools

import jax
import jax.numpy as jnp
from jax.experimental import pallas as pl
from jax.experimental.pallas import tpu as pltpu


def _min_value(dtype):
    """Identity element for max in the given dtype."""
    dtype = jnp.dtype(dtype)
    if jnp.issubdtype(dtype, jnp.floating):
        return jnp.array(-jnp.inf, dtype)
    return jnp.array(jnp.iinfo(dtype).min, dtype)


def _strided(start, size, stride):
    return pl.ds(start, size) if stride == 1 else pl.ds(start, size, stride=stride)


def _maxpool2d_kernel(x_ref, o_ref, *, k, s, p, H, W, Ho, Wo):
    """x_ref: (H, W, BP) plane-batched block; o_ref: (Ho, Wo, BP)."""
    # Edge taps only cover part of the output (when p > 0), so initialize the
    # whole output block once with the max-identity and update per tap.
    o_ref[...] = jnp.full(o_ref.shape, _min_value(o_ref.dtype), o_ref.dtype)

    for kh in range(k):
        # Output rows ho for which input row ho*s + kh - p lies inside [0, H).
        ho_lo = max(0, -((kh - p) // s))              # = ceil((p - kh) / s)
        ho_hi = min(Ho - 1, (H - 1 + p - kh) // s)
        if ho_lo > ho_hi:
            continue
        nh = ho_hi - ho_lo + 1
        h0 = ho_lo * s + kh - p                       # >= 0 by construction
        for kw in range(k):
            wo_lo = max(0, -((kw - p) // s))
            wo_hi = min(Wo - 1, (W - 1 + p - kw) // s)
            if wo_lo > wo_hi:
                continue
            nw = wo_hi - wo_lo + 1
            w0 = wo_lo * s + kw - p
            # Strided tap: stride s along the outer (H) and sublane (W) dims,
            # dense along lanes (merged N*C plane axis).
            tap = x_ref[_strided(h0, nh, s), _strided(w0, nw, s), :]
            cur = o_ref[pl.ds(ho_lo, nh), pl.ds(wo_lo, nw), :]
            o_ref[pl.ds(ho_lo, nh), pl.ds(wo_lo, nw), :] = jnp.maximum(cur, tap)


def maxpool2d(x, pool_k, pool_stride=None, pool_pad=0):
    """Equivalent of nn.MaxPool2d(pool_k, pool_stride, pool_pad) on NCHW input."""
    if pool_stride is None:
        pool_stride = pool_k
    N, C, H, W = x.shape
    k, s, p = int(pool_k), int(pool_stride), int(pool_pad)
    Ho = (H + 2 * p - k) // s + 1
    Wo = (W + 2 * p - k) // s + 1
    P = N * C

    # Channels-last, lane-dense layout: (H, W, N*C).
    xp = jnp.transpose(x.reshape(P, H, W), (1, 2, 0))

    # Largest plane-batch block that stays comfortably within scoped VMEM
    # (double-buffered in + out); lane-aligned to 128 when tiling the P axis.
    itemsize = jnp.dtype(x.dtype).itemsize
    plane_bytes = H * W * itemsize
    budget = 4 << 20  # per input block
    if P * plane_bytes <= budget or P <= 128:
        bp = P
    else:
        bp = max(128, (budget // plane_bytes) // 128 * 128)
    grid = (pl.cdiv(P, bp),)

    kernel = functools.partial(
        _maxpool2d_kernel, k=k, s=s, p=p, H=H, W=W, Ho=Ho, Wo=Wo
    )

    out = pl.pallas_call(
        kernel,
        out_shape=jax.ShapeDtypeStruct((Ho, Wo, P), x.dtype),
        grid=grid,
        in_specs=[pl.BlockSpec((H, W, bp), lambda i: (0, 0, i))],
        out_specs=pl.BlockSpec((Ho, Wo, bp), lambda i: (0, 0, i)),
        compiler_params=pltpu.CompilerParams(
            dimension_semantics=("parallel",),
        ),
    )(xp)

    # Back to NCHW.
    return jnp.transpose(out, (2, 0, 1)).reshape(N, C, Ho, Wo)


if __name__ == "__main__":
    # Module construction parameters (deterministic, in-script).
    pool_k, pool_stride, pool_pad = 3, 2, 1

    key = jax.random.PRNGKey(0)
    x = jax.random.normal(key, (2, 4, 16, 16), dtype=jnp.float32)

    out = maxpool2d(x, pool_k, pool_stride, pool_pad)
    out = jax.block_until_ready(out)

    # Pure-JAX reference (same semantics as torch.nn.MaxPool2d: -inf padding).
    ref = jax.lax.reduce_window(
        x,
        -jnp.inf,
        jax.lax.max,
        window_dimensions=(1, 1, pool_k, pool_k),
        window_strides=(1, 1, pool_stride, pool_stride),
        padding=((0, 0), (0, 0), (pool_pad, pool_pad), (pool_pad, pool_pad)),
    )

    assert out.shape == ref.shape, (out.shape, ref.shape)
    assert jnp.allclose(out, ref), "maxpool2d kernel mismatch vs reference"
    print("KERNEL_OK")
</pallas_src>

<mosaic_0001>
module attributes {stable_mosaic.version = 11 : i64} {
  func.func @_maxpool2d_kernel(%arg0: i32, %arg1: memref<16x16x8xf32, #tpu.memory_space<vmem>>, %arg2: memref<8x8x8xf32, #tpu.memory_space<vmem>>) attributes {dimension_semantics = [#tpu.dimension_semantics<parallel>], iteration_bounds = array<i64: 1>, scalar_prefetch = 0 : i64, scratch_operands = 0 : i64, tpu.core_type = #tpu.core_type<tc>, window_params = [{transform_indices = @transform_0, window_bounds = array<i64: 16, 16, 8>}, {transform_indices = @transform_1, window_bounds = array<i64: 8, 8, 8>}]} {
    %cst = arith.constant 0xFF800000 : f32
    %0 = vector.broadcast %cst : f32 to vector<8x8x8xf32>
    %c0 = arith.constant 0 : index
    %c0_0 = arith.constant 0 : index
    %c0_1 = arith.constant 0 : index
    %1 = vector.load %arg2[%c0, %c0_0, %c0_1] : memref<8x8x8xf32, #tpu.memory_space<vmem>>, vector<8x8x8xf32>
    tpu.vector_store %arg2[%c0, %c0_0, %c0_1], %0 {strides = array<i32>} : memref<8x8x8xf32, #tpu.memory_space<vmem>>, vector<8x8x8xf32>,
    %c1 = arith.constant 1 : index
    %c1_2 = arith.constant 1 : index
    %c0_3 = arith.constant 0 : index
    %2 = tpu.strided_load %arg1[%c1, %c1_2, %c0_3] {strides = array<i32: 2, 2, 1>} : memref<16x16x8xf32, #tpu.memory_space<vmem>>, vector<7x7x8xf32>
    %c1_4 = arith.constant 1 : index
    %c1_5 = arith.constant 1 : index
    %c0_6 = arith.constant 0 : index
    %3 = vector.load %arg2[%c1_4, %c1_5, %c0_6] : memref<8x8x8xf32, #tpu.memory_space<vmem>>, vector<7x7x8xf32>
    %4 = arith.maximumf %3, %2 : vector<7x7x8xf32>
    %c1_7 = arith.constant 1 : index
    %c1_8 = arith.constant 1 : index
    %c0_9 = arith.constant 0 : index
    %5 = vector.load %arg2[%c1_7, %c1_8, %c0_9] : memref<8x8x8xf32, #tpu.memory_space<vmem>>, vector<7x7x8xf32>
    tpu.vector_store %arg2[%c1_7, %c1_8, %c0_9], %4 {strides = array<i32>} : memref<8x8x8xf32, #tpu.memory_space<vmem>>, vector<7x7x8xf32>,
    %c1_10 = arith.constant 1 : index
    %c0_11 = arith.constant 0 : index
    %c0_12 = arith.constant 0 : index
    %6 = tpu.strided_load %arg1[%c1_10, %c0_11, %c0_12] {strides = array<i32: 2, 2, 1>} : memref<16x16x8xf32, #tpu.memory_space<vmem>>, vector<7x8x8xf32>
    %c1_13 = arith.constant 1 : index
    %c0_14 = arith.constant 0 : index
    %c0_15 = arith.constant 0 : index
    %7 = vector.load %arg2[%c1_13, %c0_14, %c0_15] : memref<8x8x8xf32, #tpu.memory_space<vmem>>, vector<7x8x8xf32>
    %8 = arith.maximumf %7, %6 : vector<7x8x8xf32>
    %c1_16 = arith.constant 1 : index
    %c0_17 = arith.constant 0 : index
    %c0_18 = arith.constant 0 : index
    %9 = vector.load %arg2[%c1_16, %c0_17, %c0_18] : memref<8x8x8xf32, #tpu.memory_space<vmem>>, vector<7x8x8xf32>
    tpu.vector_store %arg2[%c1_16, %c0_17, %c0_18], %8 {strides = array<i32>} : memref<8x8x8xf32, #tpu.memory_space<vmem>>, vector<7x8x8xf32>,
    %c1_19 = arith.constant 1 : index
    %c1_20 = arith.constant 1 : index
    %c0_21 = arith.constant 0 : index
    %10 = tpu.strided_load %arg1[%c1_19, %c1_20, %c0_21] {strides = array<i32: 2, 2, 1>} : memref<16x16x8xf32, #tpu.memory_space<vmem>>, vector<7x8x8xf32>
    %c1_22 = arith.constant 1 : index
    %c0_23 = arith.constant 0 : index
    %c0_24 = arith.constant 0 : index
    %11 = vector.load %arg2[%c1_22, %c0_23, %c0_24] : memref<8x8x8xf32, #tpu.memory_space<vmem>>, vector<7x8x8xf32>
    %12 = arith.maximumf %11, %10 : vector<7x8x8xf32>
    %c1_25 = arith.constant 1 : index
    %c0_26 = arith.constant 0 : index
    %c0_27 = arith.constant 0 : index
    %13 = vector.load %arg2[%c1_25, %c0_26, %c0_27] : memref<8x8x8xf32, #tpu.memory_space<vmem>>, vector<7x8x8xf32>
    tpu.vector_store %arg2[%c1_25, %c0_26, %c0_27], %12 {strides = array<i32>} : memref<8x8x8xf32, #tpu.memory_space<vmem>>, vector<7x8x8xf32>,
    %c0_28 = arith.constant 0 : index
    %c1_29 = arith.constant 1 : index
    %c0_30 = arith.constant 0 : index
    %14 = tpu.strided_load %arg1[%c0_28, %c1_29, %c0_30] {strides = array<i32: 2, 2, 1>} : memref<16x16x8xf32, #tpu.memory_space<vmem>>, vector<8x7x8xf32>
    %c0_31 = arith.constant 0 : index
    %c1_32 = arith.constant 1 : index
    %c0_33 = arith.constant 0 : index
    %15 = vector.load %arg2[%c0_31, %c1_32, %c0_33] : memref<8x8x8xf32, #tpu.memory_space<vmem>>, vector<8x7x8xf32>
    %16 = arith.maximumf %15, %14 : vector<8x7x8xf32>
    %c0_34 = arith.constant 0 : index
    %c1_35 = arith.constant 1 : index
    %c0_36 = arith.constant 0 : index
    %17 = vector.load %arg2[%c0_34, %c1_35, %c0_36] : memref<8x8x8xf32, #tpu.memory_space<vmem>>, vector<8x7x8xf32>
    tpu.vector_store %arg2[%c0_34, %c1_35, %c0_36], %16 {strides = array<i32>} : memref<8x8x8xf32, #tpu.memory_space<vmem>>, vector<8x7x8xf32>,
    %c0_37 = arith.constant 0 : index
    %c0_38 = arith.constant 0 : index
    %c0_39 = arith.constant 0 : index
    %18 = tpu.strided_load %arg1[%c0_37, %c0_38, %c0_39] {strides = array<i32: 2, 2, 1>} : memref<16x16x8xf32, #tpu.memory_space<vmem>>, vector<8x8x8xf32>
    %c0_40 = arith.constant 0 : index
    %c0_41 = arith.constant 0 : index
    %c0_42 = arith.constant 0 : index
    %19 = vector.load %arg2[%c0_40, %c0_41, %c0_42] : memref<8x8x8xf32, #tpu.memory_space<vmem>>, vector<8x8x8xf32>
    %20 = arith.maximumf %19, %18 : vector<8x8x8xf32>
    %c0_43 = arith.constant 0 : index
    %c0_44 = arith.constant 0 : index
    %c0_45 = arith.constant 0 : index
    %21 = vector.load %arg2[%c0_43, %c0_44, %c0_45] : memref<8x8x8xf32, #tpu.memory_space<vmem>>, vector<8x8x8xf32>
    tpu.vector_store %arg2[%c0_43, %c0_44, %c0_45], %20 {strides = array<i32>} : memref<8x8x8xf32, #tpu.memory_space<vmem>>, vector<8x8x8xf32>,
    %c0_46 = arith.constant 0 : index
    %c1_47 = arith.constant 1 : index
    %c0_48 = arith.constant 0 : index
    %22 = tpu.strided_load %arg1[%c0_46, %c1_47, %c0_48] {strides = array<i32: 2, 2, 1>} : memref<16x16x8xf32, #tpu.memory_space<vmem>>, vector<8x8x8xf32>
    %c0_49 = arith.constant 0 : index
    %c0_50 = arith.constant 0 : index
    %c0_51 = arith.constant 0 : index
    %23 = vector.load %arg2[%c0_49, %c0_50, %c0_51] : memref<8x8x8xf32, #tpu.memory_space<vmem>>, vector<8x8x8xf32>
    %24 = arith.maximumf %23, %22 : vector<8x8x8xf32>
    %c0_52 = arith.constant 0 : index
    %c0_53 = arith.constant 0 : index
    %c0_54 = arith.constant 0 : index
    %25 = vector.load %arg2[%c0_52, %c0_53, %c0_54] : memref<8x8x8xf32, #tpu.memory_space<vmem>>, vector<8x8x8xf32>
    tpu.vector_store %arg2[%c0_52, %c0_53, %c0_54], %24 {strides = array<i32>} : memref<8x8x8xf32, #tpu.memory_space<vmem>>, vector<8x8x8xf32>,
    %c1_55 = arith.constant 1 : index
    %c1_56 = arith.constant 1 : index
    %c0_57 = arith.constant 0 : index
    %26 = tpu.strided_load %arg1[%c1_55, %c1_56, %c0_57] {strides = array<i32: 2, 2, 1>} : memref<16x16x8xf32, #tpu.memory_space<vmem>>, vector<8x7x8xf32>
    %c0_58 = arith.constant 0 : index
    %c1_59 = arith.constant 1 : index
    %c0_60 = arith.constant 0 : index
    %27 = vector.load %arg2[%c0_58, %c1_59, %c0_60] : memref<8x8x8xf32, #tpu.memory_space<vmem>>, vector<8x7x8xf32>
    %28 = arith.maximumf %27, %26 : vector<8x7x8xf32>
    %c0_61 = arith.constant 0 : index
    %c1_62 = arith.constant 1 : index
    %c0_63 = arith.constant 0 : index
    %29 = vector.load %arg2[%c0_61, %c1_62, %c0_63] : memref<8x8x8xf32, #tpu.memory_space<vmem>>, vector<8x7x8xf32>
    tpu.vector_store %arg2[%c0_61, %c1_62, %c0_63], %28 {strides = array<i32>} : memref<8x8x8xf32, #tpu.memory_space<vmem>>, vector<8x7x8xf32>,
    %c1_64 = arith.constant 1 : index
    %c0_65 = arith.constant 0 : index
    %c0_66 = arith.constant 0 : index
    %30 = tpu.strided_load %arg1[%c1_64, %c0_65, %c0_66] {strides = array<i32: 2, 2, 1>} : memref<16x16x8xf32, #tpu.memory_space<vmem>>, vector<8x8x8xf32>
    %c0_67 = arith.constant 0 : index
    %c0_68 = arith.constant 0 : index
    %c0_69 = arith.constant 0 : index
    %31 = vector.load %arg2[%c0_67, %c0_68, %c0_69] : memref<8x8x8xf32, #tpu.memory_space<vmem>>, vector<8x8x8xf32>
    %32 = arith.maximumf %31, %30 : vector<8x8x8xf32>
    %c0_70 = arith.constant 0 : index
    %c0_71 = arith.constant 0 : index
    %c0_72 = arith.constant 0 : index
    %33 = vector.load %arg2[%c0_70, %c0_71, %c0_72] : memref<8x8x8xf32, #tpu.memory_space<vmem>>, vector<8x8x8xf32>
    tpu.vector_store %arg2[%c0_70, %c0_71, %c0_72], %32 {strides = array<i32>} : memref<8x8x8xf32, #tpu.memory_space<vmem>>, vector<8x8x8xf32>,
    %c1_73 = arith.constant 1 : index
    %c1_74 = arith.constant 1 : index
    %c0_75 = arith.constant 0 : index
    %34 = tpu.strided_load %arg1[%c1_73, %c1_74, %c0_75] {strides = array<i32: 2, 2, 1>} : memref<16x16x8xf32, #tpu.memory_space<vmem>>, vector<8x8x8xf32>
    %c0_76 = arith.constant 0 : index
    %c0_77 = arith.constant 0 : index
    %c0_78 = arith.constant 0 : index
    %35 = vector.load %arg2[%c0_76, %c0_77, %c0_78] : memref<8x8x8xf32, #tpu.memory_space<vmem>>, vector<8x8x8xf32>
    %36 = arith.maximumf %35, %34 : vector<8x8x8xf32>
    %c0_79 = arith.constant 0 : index
    %c0_80 = arith.constant 0 : index
    %c0_81 = arith.constant 0 : index
    %37 = vector.load %arg2[%c0_79, %c0_80, %c0_81] : memref<8x8x8xf32, #tpu.memory_space<vmem>>, vector<8x8x8xf32>
    tpu.vector_store %arg2[%c0_79, %c0_80, %c0_81], %36 {strides = array<i32>} : memref<8x8x8xf32, #tpu.memory_space<vmem>>, vector<8x8x8xf32>,
    return
  }
  func.func @transform_0(%arg0: i32) -> (i32, i32, i32) {
    %c0_i32 = arith.constant 0 : i32
    %c0_i32_0 = arith.constant 0 : i32
    %c0_i32_1 = arith.constant 0 : i32
    return %c0_i32, %c0_i32_0, %arg0 : i32, i32, i32
  }
  func.func @transform_1(%arg0: i32) -> (i32, i32, i32) {
    %c0_i32 = arith.constant 0 : i32
    %c0_i32_0 = arith.constant 0 : i32
    %c0_i32_1 = arith.constant 0 : i32
    return %c0_i32, %c0_i32_0, %arg0 : i32, i32, i32
  }
}

</mosaic_0001>

<llo_original>
// kernel: tpu_custom_call.1
$region0: #{tpu_custom_call.1}
  #allocation0 [shape = 'u32[]', space=smem, size = 0x4, offset = 0x4, fixed_abs, tag = 'smem constant byte address 0x4 - core index']
  #allocation1 [shape = 'u32[144,128]{1,0:T(1,128)}', space=vmem, size = 0x12000, scoped, tag = 'internal scratch']
  %s0 = inlined_call_operand.vmem [shape: f32[16,16,8], index: 0, kind: input, shape index: {}]
  %s1 = inlined_call_operand.hbm [shape: f32[8,8,8], index: 1, kind: output, shape index: {}]
  %s2 = sld [smem:[#allocation0]]
  $region14: #{tpu_custom_call.1} parent=0
    _
  %s4 = ssub.s32 1, %s2
  %s5 = scalar_select 0, %s4, %s2
  $region1: #{tpu_custom_call.1} parent=0
    #allocation2 [shape = 'u8[32768]{0}', space=vmem, size = 0x8000, scoped, tag = 'output window, operand 0, single buffered']
    #allocation3 [shape = 's32[1]{0}', space=sflag, size = 0x4, scoped, tag = 'scoped memory for tpu_custom_call.1']
    %6 = vsyncpa [#allocation3], 0
    // Predicated region
    $region2: #{tpu_custom_call.1} parent=1 // pred_check
      _
    $region3: #{tpu_custom_call.1} parent=1 // pred_check_branch
      %8 = sbr.rel (0) target = $region5
    $region4: #{tpu_custom_call.1} parent=1 // pred_region
      _
    $region5: #{tpu_custom_call.1} parent=1 // pred_fallthru
      _
    %vm9 = vcmask 64512
    %10 = vst.msk [vmem:[#allocation2] sm:$0xff] %vm9, -inf
    %11 = vst.msk [vmem:[#allocation2 + $0x8] sm:$0xff] %vm9, -inf
    %12 = vst.msk [vmem:[#allocation2 + $0x10] sm:$0xff] %vm9, -inf
    %13 = vst.msk [vmem:[#allocation2 + $0x18] sm:$0xff] %vm9, -inf
    %14 = vst.msk [vmem:[#allocation2 + $0x20] sm:$0xff] %vm9, -inf
    %15 = vst.msk [vmem:[#allocation2 + $0x28] sm:$0xff] %vm9, -inf
    %16 = vst.msk [vmem:[#allocation2 + $0x30] sm:$0xff] %vm9, -inf
    %17 = vst.msk [vmem:[#allocation2 + $0x38] sm:$0xff] %vm9, -inf
    %s18 = scalar_lea.vmem %s0, 16
    %s19 = scalar_lea.vmem %s18, 1
    %v20 = vld [vmem:[%s19] ss:$2 sm:$0x7f]
    %s21 = scalar_lea.vmem %s18, 33
    %v22 = vld [vmem:[%s21] ss:$2 sm:$0x7f]
    %s23 = scalar_lea.vmem %s18, 65
    %v24 = vld [vmem:[%s23] ss:$2 sm:$0x7f]
    %s25 = scalar_lea.vmem %s18, 97
    %v26 = vld [vmem:[%s25] ss:$2 sm:$0x7f]
    %s27 = scalar_lea.vmem %s18, 129
    %v28 = vld [vmem:[%s27] ss:$2 sm:$0x7f]
    %s29 = scalar_lea.vmem %s18, 161
    %v30 = vld [vmem:[%s29] ss:$2 sm:$0x7f]
    %s31 = scalar_lea.vmem %s18, 193
    %v32 = vld [vmem:[%s31] ss:$2 sm:$0x7f]
    %s33 = scalar_lea.vmem [#allocation2], 8
    %v34 = vld [vmem:[%s33 + $0x1] sm:$0x7f]
    %v35 = vld [vmem:[%s33 + $0x9] sm:$0x7f]
    %v36 = vld [vmem:[%s33 + $0x11] sm:$0x7f]
    %v37 = vld [vmem:[%s33 + $0x19] sm:$0x7f]
    %v38 = vld [vmem:[%s33 + $0x21] sm:$0x7f]
    %v39 = vld [vmem:[%s33 + $0x29] sm:$0x7f]
    %v40 = vld [vmem:[%s33 + $0x31] sm:$0x7f]
    %v41 = vmax.f32 %v34, %v20
    %v42 = vmax.f32 %v35, %v22
    %v43 = vmax.f32 %v36, %v24
    %v44 = vmax.f32 %v37, %v26
    %v45 = vmax.f32 %v38, %v28
    %v46 = vmax.f32 %v39, %v30
    %v47 = vmax.f32 %v40, %v32
    %vm48 = vcmask 63488
    %49 = vst.msk [vmem:[%s33 + $0x1] sm:$0x7f] %vm48, %v41
    %50 = vst.msk [vmem:[%s33 + $0x9] sm:$0x7f] %vm48, %v42
    %51 = vst.msk [vmem:[%s33 + $0x11] sm:$0x7f] %vm48, %v43
    %52 = vst.msk [vmem:[%s33 + $0x19] sm:$0x7f] %vm48, %v44
    %53 = vst.msk [vmem:[%s33 + $0x21] sm:$0x7f] %vm48, %v45
    %54 = vst.msk [vmem:[%s33 + $0x29] sm:$0x7f] %vm48, %v46
    %55 = vst.msk [vmem:[%s33 + $0x31] sm:$0x7f] %vm48, %v47
    %v56 = vld [vmem:[%s18] ss:$2 sm:$0xff]
    %s57 = scalar_lea.vmem %s18, 32
    %v58 = vld [vmem:[%s57] ss:$2 sm:$0xff]
    %s59 = scalar_lea.vmem %s18, 64
    %v60 = vld [vmem:[%s59] ss:$2 sm:$0xff]
    %s61 = scalar_lea.vmem %s18, 96
    %v62 = vld [vmem:[%s61] ss:$2 sm:$0xff]
    %s63 = scalar_lea.vmem %s18, 128
    %v64 = vld [vmem:[%s63] ss:$2 sm:$0xff]
    %s65 = scalar_lea.vmem %s18, 160
    %v66 = vld [vmem:[%s65] ss:$2 sm:$0xff]
    %s67 = scalar_lea.vmem %s18, 192
    %v68 = vld [vmem:[%s67] ss:$2 sm:$0xff]
    %v69 = vld [vmem:[%s33] sm:$0xff]
    %v70 = vld [vmem:[%s33 + $0x8] sm:$0xff]
    %v71 = vld [vmem:[%s33 + $0x10] sm:$0xff]
    %v72 = vld [vmem:[%s33 + $0x18] sm:$0xff]
    %v73 = vld [vmem:[%s33 + $0x20] sm:$0xff]
    %v74 = vld [vmem:[%s33 + $0x28] sm:$0xff]
    %v75 = vld [vmem:[%s33 + $0x30] sm:$0xff]
    %v76 = vmax.f32 %v69, %v56
    %v77 = vmax.f32 %v70, %v58
    %v78 = vmax.f32 %v71, %v60
    %v79 = vmax.f32 %v72, %v62
    %v80 = vmax.f32 %v73, %v64
    %v81 = vmax.f32 %v74, %v66
    %v82 = vmax.f32 %v75, %v68
    %83 = vst.msk [vmem:[%s33] sm:$0xff] %vm9, %v76
    %84 = vst.msk [vmem:[%s33 + $0x8] sm:$0xff] %vm9, %v77
    %85 = vst.msk [vmem:[%s33 + $0x10] sm:$0xff] %vm9, %v78
    %86 = vst.msk [vmem:[%s33 + $0x18] sm:$0xff] %vm9, %v79
    %87 = vst.msk [vmem:[%s33 + $0x20] sm:$0xff] %vm9, %v80
    %88 = vst.msk [vmem:[%s33 + $0x28] sm:$0xff] %vm9, %v81
    %89 = vst.msk [vmem:[%s33 + $0x30] sm:$0xff] %vm9, %v82
    %v90 = vld [vmem:[%s19] ss:$2 sm:$0xff]
    %v91 = vld [vmem:[%s21] ss:$2 sm:$0xff]
    %v92 = vld [vmem:[%s23] ss:$2 sm:$0xff]
    %v93 = vld [vmem:[%s25] ss:$2 sm:$0xff]
    %v94 = vld [vmem:[%s27] ss:$2 sm:$0xff]
    %v95 = vld [vmem:[%s29] ss:$2 sm:$0xff]
    %v96 = vld [vmem:[%s31] ss:$2 sm:$0xff]
    %v97 = vld [vmem:[%s33] sm:$0xff]
    %v98 = vld [vmem:[%s33 + $0x8] sm:$0xff]
    %v99 = vld [vmem:[%s33 + $0x10] sm:$0xff]
    %v100 = vld [vmem:[%s33 + $0x18] sm:$0xff]
    %v101 = vld [vmem:[%s33 + $0x20] sm:$0xff]
    %v102 = vld [vmem:[%s33 + $0x28] sm:$0xff]
    %v103 = vld [vmem:[%s33 + $0x30] sm:$0xff]
    %v104 = vmax.f32 %v97, %v90
    %v105 = vmax.f32 %v98, %v91
    %v106 = vmax.f32 %v99, %v92
    %v107 = vmax.f32 %v100, %v93
    %v108 = vmax.f32 %v101, %v94
    %v109 = vmax.f32 %v102, %v95
    %v110 = vmax.f32 %v103, %v96
    %111 = vst.msk [vmem:[%s33] sm:$0xff] %vm9, %v104
    %112 = vst.msk [vmem:[%s33 + $0x8] sm:$0xff] %vm9, %v105
    %113 = vst.msk [vmem:[%s33 + $0x10] sm:$0xff] %vm9, %v106
    %114 = vst.msk [vmem:[%s33 + $0x18] sm:$0xff] %vm9, %v107
    %115 = vst.msk [vmem:[%s33 + $0x20] sm:$0xff] %vm9, %v108
    %116 = vst.msk [vmem:[%s33 + $0x28] sm:$0xff] %vm9, %v109
    %117 = vst.msk [vmem:[%s33 + $0x30] sm:$0xff] %vm9, %v110
    %s118 = scalar_lea.vmem %s0, 1
    %v119 = vld [vmem:[%s118] ss:$2 sm:$0x7f]
    %s120 = scalar_lea.vmem %s0, 33
    %v121 = vld [vmem:[%s120] ss:$2 sm:$0x7f]
    %s122 = scalar_lea.vmem %s0, 65
    %v123 = vld [vmem:[%s122] ss:$2 sm:$0x7f]
    %s124 = scalar_lea.vmem %s0, 97
    %v125 = vld [vmem:[%s124] ss:$2 sm:$0x7f]
    %s126 = scalar_lea.vmem %s0, 129
    %v127 = vld [vmem:[%s126] ss:$2 sm:$0x7f]
    %s128 = scalar_lea.vmem %s0, 161
    %v129 = vld [vmem:[%s128] ss:$2 sm:$0x7f]
    %s130 = scalar_lea.vmem %s0, 193
    %v131 = vld [vmem:[%s130] ss:$2 sm:$0x7f]
    %s132 = scalar_lea.vmem %s0, 225
    %v133 = vld [vmem:[%s132] ss:$2 sm:$0x7f]
    %v134 = vld [vmem:[#allocation2 + $0x1] sm:$0x7f]
    %v135 = vld [vmem:[#allocation2 + $0x9] sm:$0x7f]
    %v136 = vld [vmem:[#allocation2 + $0x11] sm:$0x7f]
    %v137 = vld [vmem:[#allocation2 + $0x19] sm:$0x7f]
    %v138 = vld [vmem:[#allocation2 + $0x21] sm:$0x7f]
    %v139 = vld [vmem:[#allocation2 + $0x29] sm:$0x7f]
    %v140 = vld [vmem:[#allocation2 + $0x31] sm:$0x7f]
    %v141 = vld [vmem:[#allocation2 + $0x39] sm:$0x7f]
    %v142 = vmax.f32 %v134, %v119
    %v143 = vmax.f32 %v135, %v121
    %v144 = vmax.f32 %v136, %v123
    %v145 = vmax.f32 %v137, %v125
    %v146 = vmax.f32 %v138, %v127
    %v147 = vmax.f32 %v139, %v129
    %v148 = vmax.f32 %v140, %v131
    %v149 = vmax.f32 %v141, %v133
    %150 = vst.msk [vmem:[#allocation2 + $0x1] sm:$0x7f] %vm48, %v142
    %151 = vst.msk [vmem:[#allocation2 + $0x9] sm:$0x7f] %vm48, %v143
    %152 = vst.msk [vmem:[#allocation2 + $0x11] sm:$0x7f] %vm48, %v144
    %153 = vst.msk [vmem:[#allocation2 + $0x19] sm:$0x7f] %vm48, %v145
    %154 = vst.msk [vmem:[#allocation2 + $0x21] sm:$0x7f] %vm48, %v146
    %155 = vst.msk [vmem:[#allocation2 + $0x29] sm:$0x7f] %vm48, %v147
    %156 = vst.msk [vmem:[#allocation2 + $0x31] sm:$0x7f] %vm48, %v148
    %157 = vst.msk [vmem:[#allocation2 + $0x39] sm:$0x7f] %vm48, %v149
    %v158 = vld [vmem:[%s0] ss:$2 sm:$0xff]
    %s159 = scalar_lea.vmem %s0, 32
    %v160 = vld [vmem:[%s159] ss:$2 sm:$0xff]
    %s161 = scalar_lea.vmem %s0, 64
    %v162 = vld [vmem:[%s161] ss:$2 sm:$0xff]
    %s163 = scalar_lea.vmem %s0, 96
    %v164 = vld [vmem:[%s163] ss:$2 sm:$0xff]
    %s165 = scalar_lea.vmem %s0, 128
    %v166 = vld [vmem:[%s165] ss:$2 sm:$0xff]
    %s167 = scalar_lea.vmem %s0, 160
    %v168 = vld [vmem:[%s167] ss:$2 sm:$0xff]
    %s169 = scalar_lea.vmem %s0, 192
    %v170 = vld [vmem:[%s169] ss:$2 sm:$0xff]
    %s171 = scalar_lea.vmem %s0, 224
    %v172 = vld [vmem:[%s171] ss:$2 sm:$0xff]
    %v173 = vld [vmem:[#allocation2] sm:$0xff]
    %v174 = vld [vmem:[#allocation2 + $0x8] sm:$0xff]
    %v175 = vld [vmem:[#allocation2 + $0x10] sm:$0xff]
    %v176 = vld [vmem:[#allocation2 + $0x18] sm:$0xff]
    %v177 = vld [vmem:[#allocation2 + $0x20] sm:$0xff]
    %v178 = vld [vmem:[#allocation2 + $0x28] sm:$0xff]
    %v179 = vld [vmem:[#allocation2 + $0x30] sm:$0xff]
    %v180 = vld [vmem:[#allocation2 + $0x38] sm:$0xff]
    %v181 = vmax.f32 %v173, %v158
    %v182 = vmax.f32 %v174, %v160
    %v183 = vmax.f32 %v175, %v162
    %v184 = vmax.f32 %v176, %v164
    %v185 = vmax.f32 %v177, %v166
    %v186 = vmax.f32 %v178, %v168
    %v187 = vmax.f32 %v179, %v170
    %v188 = vmax.f32 %v180, %v172
    %189 = vst.msk [vmem:[#allocation2] sm:$0xff] %vm9, %v181
    %190 = vst.msk [vmem:[#allocation2 + $0x8] sm:$0xff] %vm9, %v182
    %191 = vst.msk [vmem:[#allocation2 + $0x10] sm:$0xff] %vm9, %v183
    %192 = vst.msk [vmem:[#allocation2 + $0x18] sm:$0xff] %vm9, %v184
    %193 = vst.msk [vmem:[#allocation2 + $0x20] sm:$0xff] %vm9, %v185
    %194 = vst.msk [vmem:[#allocation2 + $0x28] sm:$0xff] %vm9, %v186
    %195 = vst.msk [vmem:[#allocation2 + $0x30] sm:$0xff] %vm9, %v187
    %196 = vst.msk [vmem:[#allocation2 + $0x38] sm:$0xff] %vm9, %v188
    %v197 = vld [vmem:[%s118] ss:$2 sm:$0xff]
    %v198 = vld [vmem:[%s120] ss:$2 sm:$0xff]
    %v199 = vld [vmem:[%s122] ss:$2 sm:$0xff]
    %v200 = vld [vmem:[%s124] ss:$2 sm:$0xff]
    %v201 = vld [vmem:[%s126] ss:$2 sm:$0xff]
    %v202 = vld [vmem:[%s128] ss:$2 sm:$0xff]
    %v203 = vld [vmem:[%s130] ss:$2 sm:$0xff]
    %v204 = vld [vmem:[%s132] ss:$2 sm:$0xff]
    %v205 = vld [vmem:[#allocation2] sm:$0xff]
    %v206 = vld [vmem:[#allocation2 + $0x8] sm:$0xff]
    %v207 = vld [vmem:[#allocation2 + $0x10] sm:$0xff]
    %v208 = vld [vmem:[#allocation2 + $0x18] sm:$0xff]
    %v209 = vld [vmem:[#allocation2 + $0x20] sm:$0xff]
    %v210 = vld [vmem:[#allocation2 + $0x28] sm:$0xff]
    %v211 = vld [vmem:[#allocation2 + $0x30] sm:$0xff]
    %v212 = vld [vmem:[#allocation2 + $0x38] sm:$0xff]
    %v213 = vmax.f32 %v205, %v197
    %v214 = vmax.f32 %v206, %v198
    %v215 = vmax.f32 %v207, %v199
    %v216 = vmax.f32 %v208, %v200
    %v217 = vmax.f32 %v209, %v201
    %v218 = vmax.f32 %v210, %v202
    %v219 = vmax.f32 %v211, %v203
    %v220 = vmax.f32 %v212, %v204
    %221 = vst.msk [vmem:[#allocation2] sm:$0xff] %vm9, %v213
    %222 = vst.msk [vmem:[#allocation2 + $0x8] sm:$0xff] %vm9, %v214
    %223 = vst.msk [vmem:[#allocation2 + $0x10] sm:$0xff] %vm9, %v215
    %224 = vst.msk [vmem:[#allocation2 + $0x18] sm:$0xff] %vm9, %v216
    %225 = vst.msk [vmem:[#allocation2 + $0x20] sm:$0xff] %vm9, %v217
    %226 = vst.msk [vmem:[#allocation2 + $0x28] sm:$0xff] %vm9, %v218
    %227 = vst.msk [vmem:[#allocation2 + $0x30] sm:$0xff] %vm9, %v219
    %228 = vst.msk [vmem:[#allocation2 + $0x38] sm:$0xff] %vm9, %v220
    %v229 = vld [vmem:[%s19] ss:$2 sm:$0x7f]
    %v230 = vld [vmem:[%s21] ss:$2 sm:$0x7f]
    %v231 = vld [vmem:[%s23] ss:$2 sm:$0x7f]
    %v232 = vld [vmem:[%s25] ss:$2 sm:$0x7f]
    %v233 = vld [vmem:[%s27] ss:$2 sm:$0x7f]
    %v234 = vld [vmem:[%s29] ss:$2 sm:$0x7f]
    %v235 = vld [vmem:[%s31] ss:$2 sm:$0x7f]
    %s236 = scalar_lea.vmem %s18, 225
    %v237 = vld [vmem:[%s236] ss:$2 sm:$0x7f]
    %v238 = vld [vmem:[#allocation2 + $0x1] sm:$0x7f]
    %v239 = vld [vmem:[#allocation2 + $0x9] sm:$0x7f]
    %v240 = vld [vmem:[#allocation2 + $0x11] sm:$0x7f]
    %v241 = vld [vmem:[#allocation2 + $0x19] sm:$0x7f]
    %v242 = vld [vmem:[#allocation2 + $0x21] sm:$0x7f]
    %v243 = vld [vmem:[#allocation2 + $0x29] sm:$0x7f]
    %v244 = vld [vmem:[#allocation2 + $0x31] sm:$0x7f]
    %v245 = vld [vmem:[#allocation2 + $0x39] sm:$0x7f]
    %v246 = vmax.f32 %v238, %v229
    %v247 = vmax.f32 %v239, %v230
    %v248 = vmax.f32 %v240, %v231
    %v249 = vmax.f32 %v241, %v232
    %v250 = vmax.f32 %v242, %v233
    %v251 = vmax.f32 %v243, %v234
    %v252 = vmax.f32 %v244, %v235
    %v253 = vmax.f32 %v245, %v237
    %254 = vst.msk [vmem:[#allocation2 + $0x1] sm:$0x7f] %vm48, %v246
    %255 = vst.msk [vmem:[#allocation2 + $0x9] sm:$0x7f] %vm48, %v247
    %256 = vst.msk [vmem:[#allocation2 + $0x11] sm:$0x7f] %vm48, %v248
    %257 = vst.msk [vmem:[#allocation2 + $0x19] sm:$0x7f] %vm48, %v249
    %258 = vst.msk [vmem:[#allocation2 + $0x21] sm:$0x7f] %vm48, %v250
    %259 = vst.msk [vmem:[#allocation2 + $0x29] sm:$0x7f] %vm48, %v251
    %260 = vst.msk [vmem:[#allocation2 + $0x31] sm:$0x7f] %vm48, %v252
    %261 = vst.msk [vmem:[#allocation2 + $0x39] sm:$0x7f] %vm48, %v253
    %v262 = vld [vmem:[%s18] ss:$2 sm:$0xff]
    %v263 = vld [vmem:[%s57] ss:$2 sm:$0xff]
    %v264 = vld [vmem:[%s59] ss:$2 sm:$0xff]
    %v265 = vld [vmem:[%s61] ss:$2 sm:$0xff]
    %v266 = vld [vmem:[%s63] ss:$2 sm:$0xff]
    %v267 = vld [vmem:[%s65] ss:$2 sm:$0xff]
    %v268 = vld [vmem:[%s67] ss:$2 sm:$0xff]
    %s269 = scalar_lea.vmem %s18, 224
    %v270 = vld [vmem:[%s269] ss:$2 sm:$0xff]
    %v271 = vld [vmem:[#allocation2] sm:$0xff]
    %v272 = vld [vmem:[#allocation2 + $0x8] sm:$0xff]
    %v273 = vld [vmem:[#allocation2 + $0x10] sm:$0xff]
    %v274 = vld [vmem:[#allocation2 + $0x18] sm:$0xff]
    %v275 = vld [vmem:[#allocation2 + $0x20] sm:$0xff]
    %v276 = vld [vmem:[#allocation2 + $0x28] sm:$0xff]
    %v277 = vld [vmem:[#allocation2 + $0x30] sm:$0xff]
    %v278 = vld [vmem:[#allocation2 + $0x38] sm:$0xff]
    %v279 = vmax.f32 %v271, %v262
    %v280 = vmax.f32 %v272, %v263
    %v281 = vmax.f32 %v273, %v264
    %v282 = vmax.f32 %v274, %v265
    %v283 = vmax.f32 %v275, %v266
    %v284 = vmax.f32 %v276, %v267
    %v285 = vmax.f32 %v277, %v268
    %v286 = vmax.f32 %v278, %v270
    %287 = vst.msk [vmem:[#allocation2] sm:$0xff] %vm9, %v279
    %288 = vst.msk [vmem:[#allocation2 + $0x8] sm:$0xff] %vm9, %v280
    %289 = vst.msk [vmem:[#allocation2 + $0x10] sm:$0xff] %vm9, %v281
    %290 = vst.msk [vmem:[#allocation2 + $0x18] sm:$0xff] %vm9, %v282
    %291 = vst.msk [vmem:[#allocation2 + $0x20] sm:$0xff] %vm9, %v283
    %292 = vst.msk [vmem:[#allocation2 + $0x28] sm:$0xff] %vm9, %v284
    %293 = vst.msk [vmem:[#allocation2 + $0x30] sm:$0xff] %vm9, %v285
    %294 = vst.msk [vmem:[#allocation2 + $0x38] sm:$0xff] %vm9, %v286
    %v295 = vld [vmem:[%s19] ss:$2 sm:$0xff]
    %v296 = vld [vmem:[%s21] ss:$2 sm:$0xff]
    %v297 = vld [vmem:[%s23] ss:$2 sm:$0xff]
    %v298 = vld [vmem:[%s25] ss:$2 sm:$0xff]
    %v299 = vld [vmem:[%s27] ss:$2 sm:$0xff]
    %v300 = vld [vmem:[%s29] ss:$2 sm:$0xff]
    %v301 = vld [vmem:[%s31] ss:$2 sm:$0xff]
    %v302 = vld [vmem:[%s236] ss:$2 sm:$0xff]
    %v303 = vld [vmem:[#allocation2] sm:$0xff]
    %v304 = vld [vmem:[#allocation2 + $0x8] sm:$0xff]
    %v305 = vld [vmem:[#allocation2 + $0x10] sm:$0xff]
    %v306 = vld [vmem:[#allocation2 + $0x18] sm:$0xff]
    %v307 = vld [vmem:[#allocation2 + $0x20] sm:$0xff]
    %v308 = vld [vmem:[#allocation2 + $0x28] sm:$0xff]
    %v309 = vld [vmem:[#allocation2 + $0x30] sm:$0xff]
    %v310 = vld [vmem:[#allocation2 + $0x38] sm:$0xff]
    %v311 = vmax.f32 %v303, %v295
    %v312 = vmax.f32 %v304, %v296
    %v313 = vmax.f32 %v305, %v297
    %v314 = vmax.f32 %v306, %v298
    %v315 = vmax.f32 %v307, %v299
    %v316 = vmax.f32 %v308, %v300
    %v317 = vmax.f32 %v309, %v301
    %v318 = vmax.f32 %v310, %v302
    %319 = vst.msk [vmem:[#allocation2] sm:$0xff] %vm9, %v311
    %320 = vst.msk [vmem:[#allocation2 + $0x8] sm:$0xff] %vm9, %v312
    %321 = vst.msk [vmem:[#allocation2 + $0x10] sm:$0xff] %vm9, %v313
    %322 = vst.msk [vmem:[#allocation2 + $0x18] sm:$0xff] %vm9, %v314
    %323 = vst.msk [vmem:[#allocation2 + $0x20] sm:$0xff] %vm9, %v315
    %324 = vst.msk [vmem:[#allocation2 + $0x28] sm:$0xff] %vm9, %v316
    %325 = vst.msk [vmem:[#allocation2 + $0x30] sm:$0xff] %vm9, %v317
    %326 = vst.msk [vmem:[#allocation2 + $0x38] sm:$0xff] %vm9, %v318
    // Predicated region
    $region6: #{tpu_custom_call.1} parent=1 // pred_check
      _
    $region7: #{tpu_custom_call.1} parent=1 // pred_check_branch
      %328 = sbr.rel (0) target = $region9
    $region8: #{tpu_custom_call.1} parent=1 // pred_region
      %s330 = ssub.s32 1024, 1024
      %331 = vsyncadd [#allocation3], %s330
      %s332 = sshll.u32 [#allocation2], 4
      %s333 = int_to_ptr.vmem [resolvable:$true] %s332
      %338 = dma.vmem_to_hbm [thread:$0]  %s333, 1024, %s1, [#allocation3], 128, 128, 8
    $region9: #{tpu_custom_call.1} parent=1 // pred_fallthru
      _
    // Predicated region
    $region10: #{tpu_custom_call.1} parent=1 // pred_check
      _
    $region11: #{tpu_custom_call.1} parent=1 // pred_check_branch
      %340 = sbr.rel (0) target = $region13
    $region12: #{tpu_custom_call.1} parent=1 // pred_region
      %341 = dma.done [#allocation3], 1024
    $region13: #{tpu_custom_call.1} parent=1 // pred_fallthru
      _
    %342 = vsyncpa [#allocation3], 1

</llo_original>
